<compile_context>
chip_gen: v7x
topology: tpu7x:2x2x1
jax: 0.10.0
libtpu: 0.0.40
codegen_flags: <defaults>
</compile_context>

<pallas_src>
import functools

import jax
import jax.numpy as jnp
from jax.experimental import pallas as pl
from jax.experimental.pallas import tpu as pltpu


# --------------------------------------------------------------------------
# Hardware-aware configuration helpers (trace-time only, cached).
# --------------------------------------------------------------------------
@functools.lru_cache(maxsize=None)
def _vmem_budget_bytes():
    """(tile budget, vmem_limit_bytes) derived from physical VMEM."""
    try:
        phys = int(pltpu.get_tpu_info().vmem_capacity_bytes)
    except Exception:  # very old runtimes / non-TPU tracing
        phys = 128 * 1024 * 1024
    budget = min(phys // 2, 64 * 1024 * 1024)          # 64 MiB v5e/v6e, 32 MiB v7x
    vmem_limit = min(phys * 3 // 4, 100 * 1024 * 1024)  # scoped-VMEM limit to request
    return budget, vmem_limit


@functools.lru_cache(maxsize=None)
def _bf16_eup_ok():
    """True on chips whose EUP/VPU support bf16 (v6e, v7x)."""
    try:
        kind = jax.devices()[0].device_kind.lower()
    except Exception:
        return True
    # v2-v5 have no bf16 EUP/VPU -> keep f32 transcendentals there.
    return not any(tag in kind for tag in ("v2", "v3", "v4", "v5"))


def _choose_tile(B, C, y_dtype, t_dtype, budget):
    """Pick (batch tile, pipeline depth) against the VMEM budget."""
    y_dt, t_dt = jnp.dtype(y_dtype), jnp.dtype(t_dtype)
    # Packed-sublane granularity: bf16 packs (16, 128) per vreg.
    sub = 16 if (y_dt == jnp.bfloat16 or t_dt == jnp.bfloat16) else 8
    in_bytes = y_dt.itemsize + t_dt.itemsize

    def max_tb(nbuf):
        # nbuf pipeline buffers for each of the 2 row inputs (native dtype)
        # + ~2 (TB, C)-sized f32 temporaries live inside the kernel body.
        per_row = nbuf * C * in_bytes + 2 * C * 4 + 64
        return max(sub, int(budget // per_row) // sub * sub)

    nbuf = 2
    tb = min(max_tb(2), 2048)
    if tb < 128:
        # VMEM-constrained (very large C): short per-step DMAs -> deepen the
        # pipeline so issue latency / fixed step overhead is hidden.
        nbuf = 3
        tb = min(max_tb(3), 2048)

    b_round = -(-B // sub) * sub
    if b_round <= tb:
        if b_round >= 2 * sub:
            # Whole batch fits in one tile -> still split into two equal tiles
            # so a "parallel" grid axis can feed both v7x TensorCores.
            tb = -(-(b_round // 2) // sub) * sub
        else:
            tb = b_round
    else:
        # Multiple tiles needed: prefer an even, balanced tile count.
        n = -(-b_round // tb)
        if n % 2:
            n += 1
        bal = -(-b_round // n)                 # ceil(rows / n)
        bal = -(-bal // sub) * sub             # round up to sublane granularity
        tb = max(sub, min(tb, bal))
    return tb, nbuf


# --------------------------------------------------------------------------
# Kernel bodies.
# --------------------------------------------------------------------------
def _row_loss(y, t):
    """Per-row KL term, shape (TB, 1), accumulated in f32.

    sum_c [ t*log t - t*log_softmax(y) ]  ==  sum_c [ t * (log t - y + lse(y)) ]
    (identical per element, just fused).  y/t may be bf16 so exp/log run on the
    bf16 EUP path of v6e/v7x; all sums accumulate in f32.
    """
    f32 = jnp.float32
    row_max = jnp.max(y, axis=-1, keepdims=True)
    e = jnp.exp(y - row_max)                                   # EUP, native dtype
    lse = jnp.log(jnp.sum(e.astype(f32), axis=-1, keepdims=True)) + row_max.astype(f32)
    # NOTE: target==0 gives 0*log(0) = NaN, exactly matching torch.
    log_t = jnp.log(t)                                         # EUP, native dtype
    term = t.astype(f32) * (log_t.astype(f32) - y.astype(f32) + lse)
    return jnp.sum(term, axis=-1, keepdims=True)


def _load_compute(ref, keep_bf16):
    x = ref[...]
    if keep_bf16 and x.dtype == jnp.bfloat16:
        return x
    return x.astype(jnp.float32)


def _kl_kernel_nomask(y_ref, t_ref, out_ref, *, keep_bf16):
    y = _load_compute(y_ref, keep_bf16)
    t = _load_compute(t_ref, keep_bf16)
    out_ref[...] = _row_loss(y, t)


def _kl_kernel_masked(y_ref, t_ref, m_ref, out_ref, *, keep_bf16):
    y = _load_compute(y_ref, keep_bf16)
    t = _load_compute(t_ref, keep_bf16)
    out_ref[...] = m_ref[...] * _row_loss(y, t)


# --------------------------------------------------------------------------
# Wrapper.
# --------------------------------------------------------------------------
@functools.partial(jax.jit, static_argnames=("reduce",))
def kl_divergence_pallas(y, target, mask=None, reduce=True):
    B, C = y.shape
    budget, vmem_limit = _vmem_budget_bytes()
    TB, nbuf = _choose_tile(B, C, y.dtype, target.dtype, budget)
    grid = (pl.cdiv(B, TB),)
    keep_bf16 = _bf16_eup_ok()

    if nbuf == 3:
        row_spec = pl.BlockSpec((TB, C), lambda i: (i, 0),
                                pipeline_mode=pl.Buffered(3))
    else:
        row_spec = pl.BlockSpec((TB, C), lambda i: (i, 0))
    out_spec = pl.BlockSpec((TB, 1), lambda i: (i, 0))
    cp = pltpu.CompilerParams(dimension_semantics=("parallel",),
                              vmem_limit_bytes=int(vmem_limit))

    if mask is None:
        loss = pl.pallas_call(
            functools.partial(_kl_kernel_nomask, keep_bf16=keep_bf16),
            out_shape=jax.ShapeDtypeStruct((B, 1), jnp.float32),
            grid_spec=pltpu.PrefetchScalarGridSpec(
                num_scalar_prefetch=0,
                grid=grid,
                in_specs=[row_spec, row_spec],
                out_specs=out_spec,
            ),
            compiler_params=cp,
        )(y, target)
    else:
        m = mask.reshape(B, 1).astype(jnp.float32)
        loss = pl.pallas_call(
            functools.partial(_kl_kernel_masked, keep_bf16=keep_bf16),
            out_shape=jax.ShapeDtypeStruct((B, 1), jnp.float32),
            grid_spec=pltpu.PrefetchScalarGridSpec(
                num_scalar_prefetch=0,
                grid=grid,
                in_specs=[row_spec, row_spec,
                          pl.BlockSpec((TB, 1), lambda i: (i, 0))],
                out_specs=out_spec,
            ),
            compiler_params=cp,
        )(y, target, m)

    loss = loss[:, 0]
    if reduce:
        # Output is tiny; keeping the per-row path preserves the "parallel"
        # grid axis (v7x 2-TC sharding) -- the XLA mean is negligible.
        return jnp.mean(loss)
    return loss


class KLDivergence:
    """Mirror of the PyTorch nn.Module (no parameters)."""

    def __init__(self, reduce):
        self.reduce = reduce

    def __call__(self, y, target, mask=None, *args, **kwargs):
        # target.detach() equivalent
        return kl_divergence_pallas(y, jax.lax.stop_gradient(target),
                                    mask, self.reduce)


def _kl_divergence_ref(y, target, mask=None, reduce=True):
    log_sm = jax.nn.log_softmax(y, axis=1)
    loss = jnp.sum(target * jnp.log(target) - target * log_sm, axis=1)
    if mask is not None:
        loss = mask * loss
    return jnp.mean(loss) if reduce else loss


if __name__ == "__main__":
    key = jax.random.PRNGKey(0)
    k1, k2, k3 = jax.random.split(key, 3)

    # Small f32 case with mask, and unmasked reduce=False.
    B, C = 8, 32
    y = jax.random.normal(k1, (B, C), dtype=jnp.float32)
    target = jax.nn.softmax(
        jax.random.normal(k2, (B, C), dtype=jnp.float32), axis=1)
    mask = (jax.random.uniform(k3, (B,)) > 0.3).astype(jnp.float32)

    out_r = KLDivergence(reduce=True)(y, target, mask)
    jax.block_until_ready(out_r)
    out_nr = KLDivergence(reduce=False)(y, target)
    jax.block_until_ready(out_nr)

    ref_r = _kl_divergence_ref(y, target, mask, reduce=True)
    ref_nr = _kl_divergence_ref(y, target, None, reduce=False)
    assert jnp.allclose(out_r, ref_r, atol=1e-5), (out_r, ref_r)
    assert jnp.allclose(out_nr, ref_nr, atol=1e-5)

    # Unaligned batch (exercises the ragged last block, no wrapper pad)
    # + bf16 inputs (native-dtype DMA, bf16 EUP path on v6e/v7x).
    B2, C2 = 13, 160
    y2 = jax.random.normal(k1, (B2, C2), dtype=jnp.bfloat16)
    t2 = jax.nn.softmax(
        jax.random.normal(k2, (B2, C2), dtype=jnp.float32), axis=1
    ).astype(jnp.bfloat16)
    out2 = KLDivergence(reduce=False)(y2, t2)
    jax.block_until_ready(out2)
    ref2 = _kl_divergence_ref(y2.astype(jnp.float32), t2.astype(jnp.float32),
                              None, reduce=False)
    assert jnp.allclose(out2, ref2, atol=5e-2, rtol=5e-2), (out2, ref2)

    print("KERNEL_OK")
</pallas_src>

<mosaic_0001>
module attributes {stable_mosaic.version = 11 : i64} {
  func.func @_kl_kernel_masked(%arg0: i32, %arg1: memref<8x32xf32, #tpu.memory_space<vmem>>, %arg2: memref<8x32xf32, #tpu.memory_space<vmem>>, %arg3: memref<8x1xf32, #tpu.memory_space<vmem>>, %arg4: memref<8x1xf32, #tpu.memory_space<vmem>>) attributes {dimension_semantics = [#tpu.dimension_semantics<parallel>], iteration_bounds = array<i64: 1>, scalar_prefetch = 0 : i64, scratch_operands = 0 : i64, tpu.core_type = #tpu.core_type<tc>, window_params = [{transform_indices = @transform_0, window_bounds = array<i64: 8, 32>}, {transform_indices = @transform_1, window_bounds = array<i64: 8, 32>}, {transform_indices = @transform_2, window_bounds = array<i64: 8, 1>}, {transform_indices = @transform_3, window_bounds = array<i64: 8, 1>}]} {
    %c0 = arith.constant 0 : index
    %c0_0 = arith.constant 0 : index
    %0 = vector.load %arg1[%c0, %c0_0] : memref<8x32xf32, #tpu.memory_space<vmem>>, vector<8x32xf32>
    %c0_1 = arith.constant 0 : index
    %c0_2 = arith.constant 0 : index
    %1 = vector.load %arg2[%c0_1, %c0_2] : memref<8x32xf32, #tpu.memory_space<vmem>>, vector<8x32xf32>
    %c0_3 = arith.constant 0 : index
    %c0_4 = arith.constant 0 : index
    %2 = vector.load %arg3[%c0_3, %c0_4] : memref<8x1xf32, #tpu.memory_space<vmem>>, vector<8x1xf32>
    %cst = arith.constant dense<0xFF800000> : vector<8xf32>
    %3 = vector.multi_reduction <maximumf>, %0, %cst [1] : vector<8x32xf32> to vector<8xf32>
    %4 = vector.shape_cast %3 : vector<8xf32> to vector<8x1xf32>
    %5 = vector.broadcast %4 : vector<8x1xf32> to vector<8x32xf32>
    %6 = arith.subf %0, %5 : vector<8x32xf32>
    %7 = math.exp %6 : vector<8x32xf32>
    %cst_5 = arith.constant dense<0.000000e+00> : vector<8xf32>
    %8 = vector.multi_reduction <add>, %7, %cst_5 [1] : vector<8x32xf32> to vector<8xf32>
    %9 = vector.shape_cast %8 : vector<8xf32> to vector<8x1xf32>
    %10 = math.log %9 : vector<8x1xf32>
    %11 = arith.addf %10, %4 : vector<8x1xf32>
    %12 = math.log %1 : vector<8x32xf32>
    %13 = arith.subf %12, %0 : vector<8x32xf32>
    %14 = vector.broadcast %11 : vector<8x1xf32> to vector<8x32xf32>
    %15 = arith.addf %13, %14 : vector<8x32xf32>
    %16 = arith.mulf %1, %15 : vector<8x32xf32>
    %cst_6 = arith.constant dense<0.000000e+00> : vector<8xf32>
    %17 = vector.multi_reduction <add>, %16, %cst_6 [1] : vector<8x32xf32> to vector<8xf32>
    %18 = vector.shape_cast %17 : vector<8xf32> to vector<8x1xf32>
    %19 = arith.mulf %2, %18 : vector<8x1xf32>
    %c0_7 = arith.constant 0 : index
    %c0_8 = arith.constant 0 : index
    %20 = vector.load %arg4[%c0_7, %c0_8] : memref<8x1xf32, #tpu.memory_space<vmem>>, vector<8x1xf32>
    tpu.vector_store %arg4[%c0_7, %c0_8], %19 {strides = array<i32>} : memref<8x1xf32, #tpu.memory_space<vmem>>, vector<8x1xf32>,
    return
  }
  func.func @transform_0(%arg0: i32) -> (i32, i32) {
    %c0_i32 = arith.constant 0 : i32
    %c0_i32_0 = arith.constant 0 : i32
    return %arg0, %c0_i32 : i32, i32
  }
  func.func @transform_1(%arg0: i32) -> (i32, i32) {
    %c0_i32 = arith.constant 0 : i32
    %c0_i32_0 = arith.constant 0 : i32
    return %arg0, %c0_i32 : i32, i32
  }
  func.func @transform_2(%arg0: i32) -> (i32, i32) {
    %c0_i32 = arith.constant 0 : i32
    %c0_i32_0 = arith.constant 0 : i32
    return %arg0, %c0_i32 : i32, i32
  }
  func.func @transform_3(%arg0: i32) -> (i32, i32) {
    %c0_i32 = arith.constant 0 : i32
    %c0_i32_0 = arith.constant 0 : i32
    return %arg0, %c0_i32 : i32, i32
  }
}

</mosaic_0001>

<llo_original>
// kernel: kl_divergence_pallas.1
$region0: #{kl_divergence_pallas.1}
  #allocation0 [shape = 'u32[]', space=smem, size = 0x4, offset = 0x4, fixed_abs, tag = 'smem constant byte address 0x4 - core index']
  #allocation1 [shape = 'u32[144,128]{1,0:T(1,128)}', space=vmem, size = 0x12000, scoped, tag = 'internal scratch']
  %s0 = inlined_call_operand.hbm [shape: f32[8,32], index: 0, kind: input, shape index: {}]
  %s1 = inlined_call_operand.hbm [shape: f32[8,32], index: 1, kind: input, shape index: {}]
  %s2 = inlined_call_operand.hbm [shape: f32[8,1], index: 2, kind: input, shape index: {}]
  %s3 = inlined_call_operand.hbm [shape: f32[8,1], index: 3, kind: output, shape index: {}]
  %s4 = sld [smem:[#allocation0]]
  $region34: #{kl_divergence_pallas.1} parent=0
    _
  %s6 = ssub.s32 1, %s4
  %s7 = scalar_select 0, %s6, %s4
  $region1: #{kl_divergence_pallas.1} parent=0
    #allocation2 [shape = 'u8[4096]{0}', space=vmem, size = 0x1000, scoped, tag = 'input window, operand 0, single buffered']
    #allocation3 [shape = 's32[1]{0}', space=sflag, size = 0x4, scoped, tag = 'scoped memory for kl_divergence_pallas.1']
    #allocation4 [shape = 's32[1]{0}', space=sflag, size = 0x4, scoped, tag = 'scoped memory for kl_divergence_pallas.1']
    #allocation5 [shape = 'u8[4096]{0}', space=vmem, size = 0x1000, scoped, tag = 'input window, operand 1, single buffered']
    #allocation6 [shape = 's32[1]{0}', space=sflag, size = 0x4, scoped, tag = 'scoped memory for kl_divergence_pallas.1']
    #allocation7 [shape = 'u8[4096]{0}', space=vmem, size = 0x1000, scoped, tag = 'input window, operand 2, single buffered']
    #allocation8 [shape = 'u8[4096]{0}', space=vmem, size = 0x1000, scoped, tag = 'output window, operand 0, single buffered']
    %8 = vsyncpa [#allocation3], 0
    %9 = vsyncpa [#allocation6], 0
    %10 = vsyncpa [#allocation4], 0
    // Predicated region
    $region2: #{kl_divergence_pallas.1} parent=1 // pred_check
      _
    $region3: #{kl_divergence_pallas.1} parent=1 // pred_check_branch
      %12 = sbr.rel (0) target = $region5
    $region4: #{kl_divergence_pallas.1} parent=1 // pred_region
      %s14 = ssub.s32 128, 128
      %15 = vsyncadd [#allocation3], %s14
      %s17 = sshll.u32 [#allocation2], 4
      %s18 = int_to_ptr.vmem [resolvable:$true] %s17
      %20 = dma.hbm_to_vmem [thread:$0]  %s0, 128, %s18, [#allocation3]
    $region5: #{kl_divergence_pallas.1} parent=1 // pred_fallthru
      _
    // Predicated region
    $region6: #{kl_divergence_pallas.1} parent=1 // pred_check
      _
    $region7: #{kl_divergence_pallas.1} parent=1 // pred_check_branch
      %22 = sbr.rel (0) target = $region9
    $region8: #{kl_divergence_pallas.1} parent=1 // pred_region
      %s24 = ssub.s32 128, 128
      %25 = vsyncadd [#allocation6], %s24
      %s27 = sshll.u32 [#allocation5], 4
      %s28 = int_to_ptr.vmem [resolvable:$true] %s27
      %30 = dma.hbm_to_vmem [thread:$0]  %s1, 128, %s28, [#allocation6]
    $region9: #{kl_divergence_pallas.1} parent=1 // pred_fallthru
      _
    // Predicated region
    $region10: #{kl_divergence_pallas.1} parent=1 // pred_check
      _
    $region11: #{kl_divergence_pallas.1} parent=1 // pred_check_branch
      %32 = sbr.rel (0) target = $region13
    $region12: #{kl_divergence_pallas.1} parent=1 // pred_region
      %s34 = ssub.s32 128, 128
      %35 = vsyncadd [#allocation6], %s34
      %s37 = sshll.u32 [#allocation7], 4
      %s38 = int_to_ptr.vmem [resolvable:$true] %s37
      %40 = dma.hbm_to_vmem [thread:$0]  %s2, 128, %s38, [#allocation6]
    $region13: #{kl_divergence_pallas.1} parent=1 // pred_fallthru
      _
    // Predicated region
    $region14: #{kl_divergence_pallas.1} parent=1 // pred_check
      _
    $region15: #{kl_divergence_pallas.1} parent=1 // pred_check_branch
      %42 = sbr.rel (0) target = $region17
    $region16: #{kl_divergence_pallas.1} parent=1 // pred_region
      %43 = dma.done [#allocation3], 128
    $region17: #{kl_divergence_pallas.1} parent=1 // pred_fallthru
      _
    // Predicated region
    $region18: #{kl_divergence_pallas.1} parent=1 // pred_check
      _
    $region19: #{kl_divergence_pallas.1} parent=1 // pred_check_branch
      %45 = sbr.rel (0) target = $region21
    $region20: #{kl_divergence_pallas.1} parent=1 // pred_region
      %46 = dma.done [#allocation6], 128
    $region21: #{kl_divergence_pallas.1} parent=1 // pred_fallthru
      _
    // Predicated region
    $region22: #{kl_divergence_pallas.1} parent=1 // pred_check
      _
    $region23: #{kl_divergence_pallas.1} parent=1 // pred_check_branch
      %48 = sbr.rel (0) target = $region25
    $region24: #{kl_divergence_pallas.1} parent=1 // pred_region
      %49 = dma.done [#allocation6], 128
    $region25: #{kl_divergence_pallas.1} parent=1 // pred_fallthru
      _
    %v50 = vld [vmem:[#allocation2] sm:$0xff]
    %v51 = vld [vmem:[#allocation5] sm:$0xff]
    %v52 = vld [vmem:[#allocation7] sm:$0xff]
    %vm53 = vcmask 261120
    %v54 = vsel %vm53, %v50, -inf
    %55 = vmax.xlane.f32.xlu0 %v54
    %v56 = vpop.xlane.xlu0 %55
    %v57 = vsub.f32 %v50, %v56
    %v58 = vmul.f32 %v57, 1.442695
    %v59 = vpow.pop %v58
    %v60 = vsel %vm53, %v59, 0.0
    %61 = vadd.xlane.f32.xlu0 %v60
    %v62 = vpop.xlane.xlu0 %61
    %v63 = vlog2.pop %v62
    %v64 = vmul.f32 %v63, 0.6931472
    %v65 = vadd.f32 %v64, %v56
    %v66 = vlog2.pop %v51
    %v67 = vmul.f32 %v66, 0.6931472
    %v68 = vsub.f32 %v67, %v50
    %v69 = vadd.f32 %v68, %v65
    %v70 = vmul.f32 %v51, %v69
    %v71 = vsel %vm53, %v70, 0.0
    %72 = vadd.xlane.f32.xlu0 %v71
    %v73 = vpop.xlane.xlu0 %72
    %v74 = vmul.f32 %v52, %v73
    %vm75 = vcmask 7168
    %76 = vst.msk [vmem:[#allocation8] sm:$0xff] %vm75, %v74
    // Predicated region
    $region26: #{kl_divergence_pallas.1} parent=1 // pred_check
      _
    $region27: #{kl_divergence_pallas.1} parent=1 // pred_check_branch
      %78 = sbr.rel (0) target = $region29
    $region28: #{kl_divergence_pallas.1} parent=1 // pred_region
      %s80 = ssub.s32 128, 128
      %81 = vsyncadd [#allocation4], %s80
      %s83 = sshll.u32 [#allocation8], 4
      %s84 = int_to_ptr.vmem [resolvable:$true] %s83
      %86 = dma.vmem_to_hbm [thread:$0]  %s84, 128, %s3, [#allocation4]
    $region29: #{kl_divergence_pallas.1} parent=1 // pred_fallthru
      _
    // Predicated region
    $region30: #{kl_divergence_pallas.1} parent=1 // pred_check
      _
    $region31: #{kl_divergence_pallas.1} parent=1 // pred_check_branch
      %88 = sbr.rel (0) target = $region33
    $region32: #{kl_divergence_pallas.1} parent=1 // pred_region
      %89 = dma.done [#allocation4], 128
    $region33: #{kl_divergence_pallas.1} parent=1 // pred_fallthru
      _
    %90 = vsyncpa [#allocation3], 1
    %91 = vsyncpa [#allocation6], 1
    %92 = vsyncpa [#allocation4], 1

</llo_original>
